<compile_context>
chip_gen: v5e
topology: v5e:2x2
jax: 0.10.0
libtpu: 0.0.40
codegen_flags: <defaults>
</compile_context>

<pallas_src>
import functools

import jax
import jax.numpy as jnp
from jax import lax
from jax.experimental import pallas as pl
from jax.experimental.pallas import tpu as pltpu

EPS = 1e-5
KH = KW = 4
STRIDE = 2
PAD = 1


def _round_up(x, m):
    return (x + m - 1) // m * m


# ---------------------------------------------------------------------------
# Pass 1: conv-as-matmul + BN statistic accumulation (+ affine fold at the end)
# ---------------------------------------------------------------------------
def _pass1_kernel(patches_ref, w_ref, gamma_ref, beta_ref,   # inputs
                  y_ref, ab_ref,                             # outputs
                  sum_ref, sumsq_ref,                        # VMEM scratch
                  *, tm, m_valid):
    i = pl.program_id(0)

    @pl.when(i == 0)
    def _():
        sum_ref[...] = jnp.zeros_like(sum_ref)
        sumsq_ref[...] = jnp.zeros_like(sumsq_ref)
        ab_ref[...] = jnp.zeros_like(ab_ref)

    # Conv tile on the MXU: bf16 operands, f32 accumulation.
    y = jnp.dot(patches_ref[...], w_ref[...], preferred_element_type=jnp.float32)
    y_ref[...] = y

    # Per-channel sum / sum-of-squares; mask rows that only exist because M was
    # padded up to a tile multiple (statics, so the branch is resolved at trace).
    if m_valid % tm != 0:
        row = i * tm + lax.broadcasted_iota(jnp.int32, (tm, 1), 0)
        ym = jnp.where(row < m_valid, y, 0.0)
    else:
        ym = y
    sum_ref[...] += jnp.sum(ym, axis=0, keepdims=True)
    sumsq_ref[...] += jnp.sum(ym * ym, axis=0, keepdims=True)

    @pl.when(i == pl.num_programs(0) - 1)
    def _():
        inv_m = jnp.float32(1.0 / m_valid)
        mean = sum_ref[...] * inv_m
        var = sumsq_ref[...] * inv_m - mean * mean       # biased var (matches BN)
        inv_std = lax.rsqrt(var + EPS)
        a = gamma_ref[...] * inv_std                     # (1, Coutp)
        b = beta_ref[...] - mean * a                     # (1, Coutp)
        ab_ref[...] = jnp.concatenate(
            [a, b, jnp.zeros((6, a.shape[1]), jnp.float32)], axis=0)


# ---------------------------------------------------------------------------
# Pass 2: fused normalize + affine + ReLU :  relu(y * a + b)
# ---------------------------------------------------------------------------
def _pass2_kernel(y_ref, ab_ref, out_ref):
    a = ab_ref[0:1, :]
    b = ab_ref[1:2, :]
    out_ref[...] = jnp.maximum(y_ref[...] * a + b, 0.0).astype(out_ref.dtype)


def pix2pix_block(x_nchw, weight_oihw, gamma, beta, *, tm=512):
    """Forward of Block(down=True, act='relu', use_dropout=False).

    x_nchw: (N, Cin, H, W) f32; weight_oihw: (Cout, Cin, 4, 4); gamma/beta: (Cout,).
    Returns (N, Cout, H//2, W//2) f32.
    """
    N, Cin, H, W = x_nchw.shape
    Cout = weight_oihw.shape[0]
    OH = (H + 2 * PAD - KH) // STRIDE + 1
    OW = (W + 2 * PAD - KW) // STRIDE + 1
    M = N * OH * OW
    K = Cin * KH * KW

    # --- glue: reflect pad + im2col, built in NHWC order (no second full-size
    #     transpose); matmul operands cast to bf16 ---
    x_nhwc = jnp.transpose(x_nchw, (0, 2, 3, 1))
    x_pad = jnp.pad(x_nhwc, ((0, 0), (PAD, PAD), (PAD, PAD), (0, 0)), mode="reflect")
    cols = []
    for kh in range(KH):
        for kw in range(KW):
            cols.append(x_pad[:, kh:kh + STRIDE * OH:STRIDE,
                              kw:kw + STRIDE * OW:STRIDE, :])      # (N, OH, OW, Cin)
    patches = jnp.stack(cols, axis=3)                              # (N, OH, OW, KHKW, Cin)
    patches = patches.reshape(M, K).astype(jnp.bfloat16)

    # weight (Cout, Cin, KH, KW) -> (KH, KW, Cin, Cout) -> (K, Cout); K ordering
    # matches the patch construction above.
    w2d = jnp.transpose(weight_oihw, (2, 3, 1, 0)).reshape(K, Cout)

    # Lane-dense channel padding (multiple of 128); padded channels get zero
    # weight/gamma/beta so they contribute nothing and are sliced off later.
    Coutp = _round_up(Cout, 128)
    w2d = jnp.pad(w2d, ((0, 0), (0, Coutp - Cout))).astype(jnp.bfloat16)
    gamma2d = jnp.pad(gamma.astype(jnp.float32).reshape(1, Cout),
                      ((0, 0), (0, Coutp - Cout)))
    beta2d = jnp.pad(beta.astype(jnp.float32).reshape(1, Cout),
                     ((0, 0), (0, Coutp - Cout)))

    # --- M tiling (pad rows with zeros; they are masked out of the BN stats) ---
    tm = _round_up(max(8, min(tm, _round_up(M, 8))), 8)
    Mp = _round_up(M, tm)
    if Mp > M:
        patches = jnp.pad(patches, ((0, Mp - M), (0, 0)))
    n_tiles = Mp // tm

    vmem_limit = 48 * 1024 * 1024  # explicit; leaves headroom on v7x (64 MiB phys)

    # ------------------------- pass 1: matmul + stats -------------------------
    cost1 = pl.CostEstimate(
        flops=2 * Mp * K * Coutp,
        transcendentals=Coutp,
        bytes_accessed=(Mp * K * 2 + K * Coutp * 2 + 2 * Coutp * 4
                        + Mp * Coutp * 4 + 8 * Coutp * 4))

    y_conv, ab = pl.pallas_call(
        functools.partial(_pass1_kernel, tm=tm, m_valid=M),
        out_shape=(jax.ShapeDtypeStruct((Mp, Coutp), jnp.float32),
                   jax.ShapeDtypeStruct((8, Coutp), jnp.float32)),
        grid_spec=pltpu.PrefetchScalarGridSpec(
            num_scalar_prefetch=0,
            grid=(n_tiles,),
            in_specs=[
                pl.BlockSpec((tm, K), lambda i: (i, 0)),        # patches tile
                pl.BlockSpec((K, Coutp), lambda i: (0, 0)),     # weights (resident)
                pl.BlockSpec((1, Coutp), lambda i: (0, 0)),     # gamma
                pl.BlockSpec((1, Coutp), lambda i: (0, 0)),     # beta
            ],
            out_specs=[
                pl.BlockSpec((tm, Coutp), lambda i: (i, 0)),    # y tiles
                pl.BlockSpec((8, Coutp), lambda i: (0, 0)),     # folded affine (a, b)
            ],
            scratch_shapes=[pltpu.VMEM((1, Coutp), jnp.float32),
                            pltpu.VMEM((1, Coutp), jnp.float32)]),
        compiler_params=pltpu.CompilerParams(
            dimension_semantics=("arbitrary",),
            vmem_limit_bytes=vmem_limit),
        cost_estimate=cost1,
    )(patches, w2d, gamma2d, beta2d)

    # -------------------- pass 2: normalize + affine + ReLU --------------------
    cost2 = pl.CostEstimate(
        flops=2 * Mp * Coutp,
        transcendentals=0,
        bytes_accessed=2 * Mp * Coutp * 4 + 8 * Coutp * 4)

    out2d = pl.pallas_call(
        _pass2_kernel,
        out_shape=jax.ShapeDtypeStruct((Mp, Coutp), jnp.float32),
        grid=(n_tiles,),
        in_specs=[pl.BlockSpec((tm, Coutp), lambda i: (i, 0)),
                  pl.BlockSpec((8, Coutp), lambda i: (0, 0))],
        out_specs=pl.BlockSpec((tm, Coutp), lambda i: (i, 0)),
        compiler_params=pltpu.CompilerParams(
            dimension_semantics=("parallel",),
            vmem_limit_bytes=vmem_limit),
        cost_estimate=cost2,
    )(y_conv, ab)

    # --- glue: drop padding, back to NCHW (external PyTorch-style contract) ---
    out = out2d[:M, :Cout].reshape(N, OH, OW, Cout)
    return jnp.transpose(out, (0, 3, 1, 2))


def reference(x_nchw, weight_oihw, gamma, beta, *, round_operands_to_bf16=False):
    """Pure-JAX reference of the PyTorch forward (training-mode BatchNorm).

    With round_operands_to_bf16=True the conv operands are rounded to bf16
    (but the conv itself runs in f32), matching the kernel's mixed-precision
    matmul so the comparison is apples-to-apples.
    """
    if round_operands_to_bf16:
        x_nchw = x_nchw.astype(jnp.bfloat16).astype(jnp.float32)
        weight_oihw = weight_oihw.astype(jnp.bfloat16).astype(jnp.float32)
    x_pad = jnp.pad(x_nchw, ((0, 0), (0, 0), (PAD, PAD), (PAD, PAD)), mode="reflect")
    y = lax.conv_general_dilated(x_pad, weight_oihw, window_strides=(STRIDE, STRIDE),
                                 padding="VALID",
                                 dimension_numbers=("NCHW", "OIHW", "NCHW"),
                                 precision=lax.Precision.HIGHEST)
    mean = y.mean(axis=(0, 2, 3), keepdims=True)
    var = y.var(axis=(0, 2, 3), keepdims=True)
    y_hat = (y - mean) / jnp.sqrt(var + EPS)
    z = y_hat * gamma.reshape(1, -1, 1, 1) + beta.reshape(1, -1, 1, 1)
    return jnp.maximum(z, 0.0)


if __name__ == "__main__":
    key = jax.random.PRNGKey(0)
    k_x, k_w, k_g, k_b = jax.random.split(key, 4)

    N, Cin, H, W = 2, 4, 16, 16
    Cout = 8

    x = jax.random.normal(k_x, (N, Cin, H, W), dtype=jnp.float32)
    weight = jax.random.normal(k_w, (Cout, Cin, KH, KW), dtype=jnp.float32) * 0.1
    gamma = 1.0 + 0.1 * jax.random.normal(k_g, (Cout,), dtype=jnp.float32)
    beta = 0.1 * jax.random.normal(k_b, (Cout,), dtype=jnp.float32)

    # tm=48 at this toy size forces a multi-tile grid with a partial last tile,
    # exercising the BN accumulate / mask / finalize path.  Default tm=512 is
    # the performance setting for realistic shapes.
    fwd = jax.jit(functools.partial(pix2pix_block, tm=48))
    out = jax.block_until_ready(fwd(x, weight, gamma, beta))

    ref_bf16 = reference(x, weight, gamma, beta, round_operands_to_bf16=True)
    ref_f32 = reference(x, weight, gamma, beta)

    assert out.shape == (N, Cout, H // 2, W // 2), out.shape
    # Tight check vs reference with the same (bf16) operand rounding.
    assert jnp.allclose(out, ref_bf16, rtol=1e-3, atol=1e-3), \
        float(jnp.max(jnp.abs(out - ref_bf16)))
    # Loose sanity check vs the full-f32 module forward.
    assert jnp.allclose(out, ref_f32, rtol=5e-2, atol=5e-2), \
        float(jnp.max(jnp.abs(out - ref_f32)))
    print("KERNEL_OK")
</pallas_src>

<mosaic_0001>
module attributes {stable_mosaic.version = 11 : i64} {
  func.func @_pass2_kernel(%arg0: i32, %arg1: memref<48x128xf32, #tpu.memory_space<vmem>>, %arg2: memref<8x128xf32, #tpu.memory_space<vmem>>, %arg3: memref<48x128xf32, #tpu.memory_space<vmem>>) attributes {dimension_semantics = [#tpu.dimension_semantics<parallel>], iteration_bounds = array<i64: 3>, scalar_prefetch = 0 : i64, scratch_operands = 0 : i64, tpu.core_type = #tpu.core_type<tc>, window_params = [{transform_indices = @transform_0, window_bounds = array<i64: 48, 128>}, {pipeline_mode = #tpu.pipeline_mode<synchronous>, transform_indices = @transform_1, window_bounds = array<i64: 8, 128>}, {transform_indices = @transform_2, window_bounds = array<i64: 48, 128>}]} {
    %c0 = arith.constant 0 : index
    %c0_0 = arith.constant 0 : index
    %0 = vector.load %arg2[%c0, %c0_0] : memref<8x128xf32, #tpu.memory_space<vmem>>, vector<1x128xf32>
    %c1 = arith.constant 1 : index
    %c0_1 = arith.constant 0 : index
    %1 = vector.load %arg2[%c1, %c0_1] : memref<8x128xf32, #tpu.memory_space<vmem>>, vector<1x128xf32>
    %c0_2 = arith.constant 0 : index
    %c0_3 = arith.constant 0 : index
    %2 = vector.load %arg1[%c0_2, %c0_3] : memref<48x128xf32, #tpu.memory_space<vmem>>, vector<48x128xf32>
    %3 = vector.broadcast %0 : vector<1x128xf32> to vector<48x128xf32>
    %4 = arith.mulf %2, %3 : vector<48x128xf32>
    %5 = vector.broadcast %1 : vector<1x128xf32> to vector<48x128xf32>
    %6 = arith.addf %4, %5 : vector<48x128xf32>
    %cst = arith.constant 0.000000e+00 : f32
    %7 = vector.broadcast %cst : f32 to vector<48x128xf32>
    %8 = arith.maximumf %6, %7 : vector<48x128xf32>
    %c0_4 = arith.constant 0 : index
    %c0_5 = arith.constant 0 : index
    %9 = vector.load %arg3[%c0_4, %c0_5] : memref<48x128xf32, #tpu.memory_space<vmem>>, vector<48x128xf32>
    tpu.vector_store %arg3[%c0_4, %c0_5], %8 {strides = array<i32>} : memref<48x128xf32, #tpu.memory_space<vmem>>, vector<48x128xf32>,
    return
  }
  func.func @transform_0(%arg0: i32) -> (i32, i32) {
    %c0_i32 = arith.constant 0 : i32
    %c0_i32_0 = arith.constant 0 : i32
    return %arg0, %c0_i32 : i32, i32
  }
  func.func @transform_1(%arg0: i32) -> (i32, i32) {
    %c0_i32 = arith.constant 0 : i32
    %c0_i32_0 = arith.constant 0 : i32
    %c0_i32_1 = arith.constant 0 : i32
    return %c0_i32, %c0_i32_0 : i32, i32
  }
  func.func @transform_2(%arg0: i32) -> (i32, i32) {
    %c0_i32 = arith.constant 0 : i32
    %c0_i32_0 = arith.constant 0 : i32
    return %arg0, %c0_i32 : i32, i32
  }
}

module attributes {stable_mosaic.version = 11 : i64} {
  func.func @_pass1_kernel(%arg0: i32, %arg1: memref<48x64xbf16, #tpu.memory_space<vmem>>, %arg2: memref<64x128xbf16, #tpu.memory_space<vmem>>, %arg3: memref<1x128xf32, #tpu.memory_space<vmem>>, %arg4: memref<1x128xf32, #tpu.memory_space<vmem>>, %arg5: memref<48x128xf32, #tpu.memory_space<vmem>>, %arg6: memref<8x128xf32, #tpu.memory_space<vmem>>, %arg7: memref<1x128xf32, #tpu.memory_space<vmem>>, %arg8: memref<1x128xf32, #tpu.memory_space<vmem>>) attributes {dimension_semantics = [#tpu.dimension_semantics<arbitrary>], iteration_bounds = array<i64: 3>, scalar_prefetch = 0 : i64, scratch_operands = 2 : i64, tpu.core_type = #tpu.core_type<tc>, window_params = [{transform_indices = @transform_0, window_bounds = array<i64: 48, 64>}, {pipeline_mode = #tpu.pipeline_mode<synchronous>, transform_indices = @transform_1, window_bounds = array<i64: 64, 128>}, {pipeline_mode = #tpu.pipeline_mode<synchronous>, transform_indices = @transform_2, window_bounds = array<i64: 1, 128>}, {pipeline_mode = #tpu.pipeline_mode<synchronous>, transform_indices = @transform_3, window_bounds = array<i64: 1, 128>}, {transform_indices = @transform_4, window_bounds = array<i64: 48, 128>}, {pipeline_mode = #tpu.pipeline_mode<synchronous>, transform_indices = @transform_5, window_bounds = array<i64: 8, 128>}]} {
    %c0_i32 = arith.constant 0 : i32
    %0 = arith.cmpi eq, %arg0, %c0_i32 : i32
    %1 = arith.extui %0 : i1 to i32
    %c0_i32_0 = arith.constant 0 : i32
    %2 = arith.cmpi ne, %1, %c0_i32_0 : i32
    scf.if %2 {
      %cst_18 = arith.constant 0.000000e+00 : f32
      %31 = vector.broadcast %cst_18 : f32 to vector<1x128xf32>
      %c0_19 = arith.constant 0 : index
      %c0_20 = arith.constant 0 : index
      %32 = vector.load %arg7[%c0_19, %c0_20] : memref<1x128xf32, #tpu.memory_space<vmem>>, vector<1x128xf32>
      tpu.vector_store %arg7[%c0_19, %c0_20], %31 {strides = array<i32>} : memref<1x128xf32, #tpu.memory_space<vmem>>, vector<1x128xf32>,
      %cst_21 = arith.constant 0.000000e+00 : f32
      %33 = vector.broadcast %cst_21 : f32 to vector<1x128xf32>
      %c0_22 = arith.constant 0 : index
      %c0_23 = arith.constant 0 : index
      %34 = vector.load %arg8[%c0_22, %c0_23] : memref<1x128xf32, #tpu.memory_space<vmem>>, vector<1x128xf32>
      tpu.vector_store %arg8[%c0_22, %c0_23], %33 {strides = array<i32>} : memref<1x128xf32, #tpu.memory_space<vmem>>, vector<1x128xf32>,
      %cst_24 = arith.constant 0.000000e+00 : f32
      %35 = vector.broadcast %cst_24 : f32 to vector<8x128xf32>
      %c0_25 = arith.constant 0 : index
      %c0_26 = arith.constant 0 : index
      %36 = vector.load %arg6[%c0_25, %c0_26] : memref<8x128xf32, #tpu.memory_space<vmem>>, vector<8x128xf32>
      tpu.vector_store %arg6[%c0_25, %c0_26], %35 {strides = array<i32>} : memref<8x128xf32, #tpu.memory_space<vmem>>, vector<8x128xf32>,
    } else {
    }
    %c0 = arith.constant 0 : index
    %c0_1 = arith.constant 0 : index
    %3 = vector.load %arg1[%c0, %c0_1] : memref<48x64xbf16, #tpu.memory_space<vmem>>, vector<48x64xbf16>
    %c0_2 = arith.constant 0 : index
    %c0_3 = arith.constant 0 : index
    %4 = vector.load %arg2[%c0_2, %c0_3] : memref<64x128xbf16, #tpu.memory_space<vmem>>, vector<64x128xbf16>
    %cst = arith.constant dense<0.000000e+00> : vector<48x128xf32>
    %5 = tpu.matmul %3, %4, %cst {dimension_numbers = #tpu.dot_dimension_numbers<[1], [0], [0], [1], [0, 0, 1, 1], [], []>} : vector<48x64xbf16>, vector<64x128xbf16>, vector<48x128xf32> -> vector<48x128xf32>
    %c0_4 = arith.constant 0 : index
    %c0_5 = arith.constant 0 : index
    %6 = vector.load %arg5[%c0_4, %c0_5] : memref<48x128xf32, #tpu.memory_space<vmem>>, vector<48x128xf32>
    tpu.vector_store %arg5[%c0_4, %c0_5], %5 {strides = array<i32>} : memref<48x128xf32, #tpu.memory_space<vmem>>, vector<48x128xf32>,
    %c48_i32 = arith.constant 48 : i32
    %7 = arith.muli %arg0, %c48_i32 : i32
    %8 = tpu.iota {dimensions = array<i32: 0>} : vector<48x1xi32>
    %9 = vector.broadcast %7 : i32 to vector<48x1xi32>
    %10 = arith.addi %9, %8 : vector<48x1xi32>
    %c128_i32 = arith.constant 128 : i32
    %11 = vector.broadcast %c128_i32 : i32 to vector<48x1xi32>
    %12 = arith.cmpi slt, %10, %11 : vector<48x1xi32>
    %cst_6 = arith.constant 0.000000e+00 : f32
    %13 = vector.shape_cast %12 : vector<48x1xi1> to vector<48x1xi1>
    %14 = vector.broadcast %13 : vector<48x1xi1> to vector<48x128xi1>
    %15 = vector.broadcast %cst_6 : f32 to vector<48x128xf32>
    %16 = arith.select %14, %5, %15 : vector<48x128xi1>, vector<48x128xf32>
    %c0_7 = arith.constant 0 : index
    %c0_8 = arith.constant 0 : index
    %17 = vector.load %arg7[%c0_7, %c0_8] : memref<1x128xf32, #tpu.memory_space<vmem>>, vector<1x128xf32>
    %cst_9 = arith.constant dense<0.000000e+00> : vector<128xf32>
    %18 = vector.multi_reduction <add>, %16, %cst_9 [0] : vector<48x128xf32> to vector<128xf32>
    %19 = vector.shape_cast %18 : vector<128xf32> to vector<1x128xf32>
    %20 = arith.addf %17, %19 : vector<1x128xf32>
    %c0_10 = arith.constant 0 : index
    %c0_11 = arith.constant 0 : index
    %21 = vector.load %arg7[%c0_10, %c0_11] : memref<1x128xf32, #tpu.memory_space<vmem>>, vector<1x128xf32>
    tpu.vector_store %arg7[%c0_10, %c0_11], %20 {strides = array<i32>} : memref<1x128xf32, #tpu.memory_space<vmem>>, vector<1x128xf32>,
    %c0_12 = arith.constant 0 : index
    %c0_13 = arith.constant 0 : index
    %22 = vector.load %arg8[%c0_12, %c0_13] : memref<1x128xf32, #tpu.memory_space<vmem>>, vector<1x128xf32>
    %23 = arith.mulf %16, %16 : vector<48x128xf32>
    %cst_14 = arith.constant dense<0.000000e+00> : vector<128xf32>
    %24 = vector.multi_reduction <add>, %23, %cst_14 [0] : vector<48x128xf32> to vector<128xf32>
    %25 = vector.shape_cast %24 : vector<128xf32> to vector<1x128xf32>
    %26 = arith.addf %22, %25 : vector<1x128xf32>
    %c0_15 = arith.constant 0 : index
    %c0_16 = arith.constant 0 : index
    %27 = vector.load %arg8[%c0_15, %c0_16] : memref<1x128xf32, #tpu.memory_space<vmem>>, vector<1x128xf32>
    tpu.vector_store %arg8[%c0_15, %c0_16], %26 {strides = array<i32>} : memref<1x128xf32, #tpu.memory_space<vmem>>, vector<1x128xf32>,
    %c2_i32 = arith.constant 2 : i32
    %28 = arith.cmpi eq, %arg0, %c2_i32 : i32
    %29 = arith.extui %28 : i1 to i32
    %c0_i32_17 = arith.constant 0 : i32
    %30 = arith.cmpi ne, %29, %c0_i32_17 : i32
    scf.if %30 {
      %c0_18 = arith.constant 0 : index
      %c0_19 = arith.constant 0 : index
      %31 = vector.load %arg7[%c0_18, %c0_19] : memref<1x128xf32, #tpu.memory_space<vmem>>, vector<1x128xf32>
      %cst_20 = arith.constant 7.812500e-03 : f32
      %32 = vector.broadcast %cst_20 : f32 to vector<1x128xf32>
      %33 = arith.mulf %31, %32 : vector<1x128xf32>
      %c0_21 = arith.constant 0 : index
      %c0_22 = arith.constant 0 : index
      %34 = vector.load %arg8[%c0_21, %c0_22] : memref<1x128xf32, #tpu.memory_space<vmem>>, vector<1x128xf32>
      %cst_23 = arith.constant 7.812500e-03 : f32
      %35 = vector.broadcast %cst_23 : f32 to vector<1x128xf32>
      %36 = arith.mulf %34, %35 : vector<1x128xf32>
      %37 = arith.mulf %33, %33 : vector<1x128xf32>
      %38 = arith.subf %36, %37 : vector<1x128xf32>
      %cst_24 = arith.constant 9.99999974E-6 : f32
      %39 = vector.broadcast %cst_24 : f32 to vector<1x128xf32>
      %40 = arith.addf %38, %39 : vector<1x128xf32>
      %41 = math.rsqrt %40 : vector<1x128xf32>
      %c0_25 = arith.constant 0 : index
      %c0_26 = arith.constant 0 : index
      %42 = vector.load %arg3[%c0_25, %c0_26] : memref<1x128xf32, #tpu.memory_space<vmem>>, vector<1x128xf32>
      %43 = arith.mulf %42, %41 : vector<1x128xf32>
      %c0_27 = arith.constant 0 : index
      %c0_28 = arith.constant 0 : index
      %44 = vector.load %arg4[%c0_27, %c0_28] : memref<1x128xf32, #tpu.memory_space<vmem>>, vector<1x128xf32>
      %45 = arith.mulf %33, %43 : vector<1x128xf32>
      %46 = arith.subf %44, %45 : vector<1x128xf32>
      %cst_29 = arith.constant 0.000000e+00 : f32
      %47 = vector.broadcast %cst_29 : f32 to vector<6x128xf32>
      %48 = tpu.concatenate %43, %46, %47 in 0 : vector<1x128xf32>, vector<1x128xf32>, vector<6x128xf32> -> vector<8x128xf32>
      %c0_30 = arith.constant 0 : index
      %c0_31 = arith.constant 0 : index
      %49 = vector.load %arg6[%c0_30, %c0_31] : memref<8x128xf32, #tpu.memory_space<vmem>>, vector<8x128xf32>
      tpu.vector_store %arg6[%c0_30, %c0_31], %48 {strides = array<i32>} : memref<8x128xf32, #tpu.memory_space<vmem>>, vector<8x128xf32>,
    } else {
    }
    return
  }
  func.func @transform_0(%arg0: i32) -> (i32, i32) {
    %c0_i32 = arith.constant 0 : i32
    %c0_i32_0 = arith.constant 0 : i32
    return %arg0, %c0_i32 : i32, i32
  }
  func.func @transform_1(%arg0: i32) -> (i32, i32) {
    %c0_i32 = arith.constant 0 : i32
    %c0_i32_0 = arith.constant 0 : i32
    %c0_i32_1 = arith.constant 0 : i32
    return %c0_i32, %c0_i32_0 : i32, i32
  }
  func.func @transform_2(%arg0: i32) -> (i32, i32) {
    %c0_i32 = arith.constant 0 : i32
    %c0_i32_0 = arith.constant 0 : i32
    %c0_i32_1 = arith.constant 0 : i32
    return %c0_i32, %c0_i32_0 : i32, i32
  }
  func.func @transform_3(%arg0: i32) -> (i32, i32) {
    %c0_i32 = arith.constant 0 : i32
    %c0_i32_0 = arith.constant 0 : i32
    %c0_i32_1 = arith.constant 0 : i32
    return %c0_i32, %c0_i32_0 : i32, i32
  }
  func.func @transform_4(%arg0: i32) -> (i32, i32) {
    %c0_i32 = arith.constant 0 : i32
    %c0_i32_0 = arith.constant 0 : i32
    return %arg0, %c0_i32 : i32, i32
  }
  func.func @transform_5(%arg0: i32) -> (i32, i32) {
    %c0_i32 = arith.constant 0 : i32
    %c0_i32_0 = arith.constant 0 : i32
    %c0_i32_1 = arith.constant 0 : i32
    return %c0_i32, %c0_i32_0 : i32, i32
  }
}

</mosaic_0001>

<llo_original>
// kernel: pix2pix_block.3
$region0: #{pix2pix_block.3}
  #allocation0 [shape = 'u32[]', space=smem, size = 0x4, offset = 0x4, fixed_abs, tag = 'smem constant byte address 0x4 - core index']
  #allocation1 [shape = 'u32[72,128]{1,0:T(1,128)}', space=vmem, size = 0x9000, scoped, tag = 'internal scratch']
  %s0 = inlined_call_operand.vmem [shape: f32[144,128], index: 0, kind: input, shape index: {}]
  %s1 = inlined_call_operand.vmem [shape: f32[8,128], index: 1, kind: input, shape index: {}]
  %s2 = inlined_call_operand.vmem [shape: f32[144,128], index: 2, kind: output, shape index: {}]
  %s3 = sld [smem:[#allocation0]]
  $region41: #{pix2pix_block.3} parent=0
    _
  %s5 = ssub.s32 1, %s3
  %s6 = scalar_select 0, %s5, %s3
  loop: start=0, step=1, limit=5
  $region2: #{pix2pix_block.3} parent=0 // loop_pre_header
    _
  $region3: #{pix2pix_block.3} parent=0 // loop_header
    %s8 = sphi 0, %s12
    %p9 = scmp.ge.s32.totalorder %s8, 5
    %s18 = sphi 0, %s20
    %s21 = sphi 0, %s18
    %s22 = sphi 0, %s21
    %s38 = sphi 0, %s22
    %s42 = sphi 0, %s42
    %s44 = sphi 0, %s42
    %s45 = sphi 0, %s44
    %s59 = sphi 0, %s45
    %s65 = sphi 0, %s67
    %s68 = sphi 0, %s65
    %s69 = sphi 0, %s68
    %s85 = sphi 0, %s69
  $region4: #{pix2pix_block.3} parent=0 // loop_header_branch
    %11 = sbr.rel (%p9) target = $region8
  $region5: #{pix2pix_block.3} parent=0 // loop_body
    %s13 = ssub.s32 %s8, 1
    %s14 = ssub.s32 %s8, 2
    %s15 = sadd.s32 %s8, 1
    %s16 = ssub.s32 %s8, %s15
    %p17 = scmp.eq.s32.totalorder %s16, 0
    %s19 = sadd.s32 %s18, 1
    %s20 = scalar_select %p17, %s18, %s19
    %p23 = pneg %p17
    %p24 = scmp.eq.s32.totalorder %s8, 2
    %p25 = por %p23, %p24
    %p26 = scmp.ne.s32.totalorder %s18, %s21
    %p27 = scmp.eq.s32.totalorder %s8, 0
    %p28 = por %p26, %p27
    %p29 = scmp.ne.s32.totalorder %s18, %s21
    %p30 = scmp.eq.s32.totalorder %s13, 2
    %p31 = por %p29, %p30
    %p32 = scmp.ne.s32.totalorder %s21, %s22
    %p33 = scmp.eq.s32.totalorder %s13, 0
    %p34 = por %p32, %p33
    %p35 = scmp.ne.s32.totalorder %s21, %s22
    %p36 = scmp.eq.s32.totalorder %s14, 2
    %p37 = por %p35, %p36
    %p39 = scmp.ne.s32.totalorder %s22, %s38
    %p40 = scmp.eq.s32.totalorder %s14, 0
    %p41 = por %p39, %p40
    %s43 = sadd.s32 %s42, 1
    %p46 = scmp.eq.s32.totalorder %s8, 2
    %p47 = scmp.ne.s32.totalorder %s42, %s44
    %p48 = scmp.eq.s32.totalorder %s8, 0
    %p49 = por %p47, %p48
    %p50 = scmp.ne.s32.totalorder %s42, %s44
    %p51 = scmp.eq.s32.totalorder %s13, 2
    %p52 = por %p50, %p51
    %p53 = scmp.ne.s32.totalorder %s44, %s45
    %p54 = scmp.eq.s32.totalorder %s13, 0
    %p55 = por %p53, %p54
    %p56 = scmp.ne.s32.totalorder %s44, %s45
    %p57 = scmp.eq.s32.totalorder %s14, 2
    %p58 = por %p56, %p57
    %p60 = scmp.ne.s32.totalorder %s45, %s59
    %p61 = scmp.eq.s32.totalorder %s14, 0
    %p62 = por %p60, %p61
    %s63 = ssub.s32 %s8, %s15
    %p64 = scmp.eq.s32.totalorder %s63, 0
    %s66 = sadd.s32 %s65, 1
    %s67 = scalar_select %p64, %s65, %s66
    %p70 = pneg %p64
    %p71 = scmp.eq.s32.totalorder %s8, 2
    %p72 = por %p70, %p71
    %p73 = scmp.ne.s32.totalorder %s65, %s68
    %p74 = scmp.eq.s32.totalorder %s8, 0
    %p75 = por %p73, %p74
    %p76 = scmp.ne.s32.totalorder %s65, %s68
    %p77 = scmp.eq.s32.totalorder %s13, 2
    %p78 = por %p76, %p77
    %p79 = scmp.ne.s32.totalorder %s68, %s69
    %p80 = scmp.eq.s32.totalorder %s13, 0
    %p81 = por %p79, %p80
    %p82 = scmp.ne.s32.totalorder %s68, %s69
    %p83 = scmp.eq.s32.totalorder %s14, 2
    %p84 = por %p82, %p83
    %p86 = scmp.ne.s32.totalorder %s69, %s85
    %p87 = scmp.eq.s32.totalorder %s14, 0
    %p88 = por %p86, %p87
    %p89 = scmp.le.s32.totalorder 1, %s8
    %p90 = scmp.lt.s32.totalorder %s8, 4
    %p91 = pnand %p89, %p90
    %p92 = pneg %p91
    // Predicated region
    $region9: #{pix2pix_block.3} parent=5 // pred_check
      _
    $region10: #{pix2pix_block.3} parent=5 // pred_check_branch
      %94 = sbr.rel (%p91) target = $region12
    $region11: #{pix2pix_block.3} parent=5 // pred_region
      %s95 = ssub.s32 %s8, 1
      // Predicated region
      $region13: #{pix2pix_block.3} parent=11 // pred_check
        %p96 = pneg %p55
      $region14: #{pix2pix_block.3} parent=11 // pred_check_branch
        %98 = sbr.rel (%p96) target = $region16
      $region15: #{pix2pix_block.3} parent=11 // pred_region
        _
      $region16: #{pix2pix_block.3} parent=11 // pred_fallthru
        _
    $region12: #{pix2pix_block.3} parent=5 // pred_fallthru
      _
    %p99 = scmp.lt.s32.totalorder %s8, 3
    // Predicated region
    $region17: #{pix2pix_block.3} parent=5 // pred_check
      %p100 = pneg %p99
    $region18: #{pix2pix_block.3} parent=5 // pred_check_branch
      %102 = sbr.rel (%p100) target = $region20
    $region19: #{pix2pix_block.3} parent=5 // pred_region
      // Predicated region
      $region21: #{pix2pix_block.3} parent=19 // pred_check
        %p103 = pneg %p28
      $region22: #{pix2pix_block.3} parent=19 // pred_check_branch
        %105 = sbr.rel (%p103) target = $region24
      $region23: #{pix2pix_block.3} parent=19 // pred_region
        %s106 = smul.u32 6, %s8
        %p107 = scmp.lt.s32.totalorder %s106, 17
        %s108 = scalar_select %p107, %s106, 17
        %s109 = smul.addr %s108, 8
        %s110 = scalar_lea.vmem %s0, %s109
        %s111 = smul.u32 6, %s8
      $region24: #{pix2pix_block.3} parent=19 // pred_fallthru
        _
    $region20: #{pix2pix_block.3} parent=5 // pred_fallthru
      _
    %p112 = scmp.le.s32.totalorder 1, %s8
    %p113 = scmp.lt.s32.totalorder %s8, 4
    %p114 = pnand %p112, %p113
    %p115 = pneg %p114
    // Predicated region
    $region25: #{pix2pix_block.3} parent=5 // pred_check
      _
    $region26: #{pix2pix_block.3} parent=5 // pred_check_branch
      %117 = sbr.rel (%p114) target = $region28
    $region27: #{pix2pix_block.3} parent=5 // pred_region
      %s118 = ssub.s32 %s8, 1
      %s119 = smul.u32 6, %s13
      %p120 = scmp.lt.s32.totalorder %s119, 17
      %s121 = scalar_select %p120, %s119, 17
      %s122 = smul.addr %s121, 8
      %s123 = scalar_lea.vmem %s0, %s122
      %p124 = pneg %p34
      %p125 = pneg %p31
      %p126 = pneg %p55
      %p127 = pneg %p52
      %p128 = pneg %p81
      %p129 = pneg %p78
      %s130 = smul.u32 6, %s13
      %p131 = scmp.lt.s32.totalorder %s130, 17
      %s132 = scalar_select %p131, %s130, 17
      %s133 = smul.addr %s132, 8
      %s134 = scalar_lea.vmem %s2, %s133
      %s135 = smul.u32 6, %s13
      %p136 = scmp.lt.s32.totalorder %s135, 17
      %s137 = scalar_select %p136, %s135, 17
      %s138 = smul.addr %s137, 8
      %s139 = scalar_lea.vmem %s0, %s138
      %s140 = smul.u32 6, %s13
      %s141 = smul.u32 6, %s13
      %p142 = scmp.lt.s32.totalorder %s141, 17
      %s143 = scalar_select %p142, %s141, 17
      %s144 = smul.addr %s143, 8
      %s145 = scalar_lea.vmem %s2, %s144
      %s146 = smul.u32 6, %s13
      %v147 = vld [vmem:[%s1] sm:$0x1]
      %v148 = vld [vmem:[%s1 + $0x1] sm:$0x1]
      %v149 = vld [vmem:[%s139] sm:$0xff]
      %v150 = vld [vmem:[%s139 + $0x8] sm:$0xff]
      %v151 = vld [vmem:[%s139 + $0x10] sm:$0xff]
      %v152 = vld [vmem:[%s139 + $0x18] sm:$0xff]
      %v153 = vld [vmem:[%s139 + $0x20] sm:$0xff]
      %v154 = vld [vmem:[%s139 + $0x28] sm:$0xff]
      %v155 = vperm.slane %v147, 0
      %v156 = vmul.f32 %v149, %v155
      %v157 = vmul.f32 %v150, %v155
      %v158 = vmul.f32 %v151, %v155
      %v159 = vmul.f32 %v152, %v155
      %v160 = vmul.f32 %v153, %v155
      %v161 = vmul.f32 %v154, %v155
      %v162 = vperm.slane %v148, 0
      %v163 = vadd.f32 %v156, %v162
      %v164 = vadd.f32 %v157, %v162
      %v165 = vadd.f32 %v158, %v162
      %v166 = vadd.f32 %v159, %v162
      %v167 = vadd.f32 %v160, %v162
      %v168 = vadd.f32 %v161, %v162
      %v169 = vmax.f32 %v163, 0.0
      %v170 = vmax.f32 %v164, 0.0
      %v171 = vmax.f32 %v165, 0.0
      %v172 = vmax.f32 %v166, 0.0
      %v173 = vmax.f32 %v167, 0.0
      %v174 = vmax.f32 %v168, 0.0
      %175 = vst [vmem:[%s145] sm:$0xff] %v169
      %176 = vst [vmem:[%s145 + $0x8] sm:$0xff] %v170
      %177 = vst [vmem:[%s145 + $0x10] sm:$0xff] %v171
      %178 = vst [vmem:[%s145 + $0x18] sm:$0xff] %v172
      %179 = vst [vmem:[%s145 + $0x20] sm:$0xff] %v173
      %180 = vst [vmem:[%s145 + $0x28] sm:$0xff] %v174
      %s181 = smul.u32 6, %s13
      %p182 = scmp.lt.s32.totalorder %s181, 17
      %s183 = scalar_select %p182, %s181, 17
      %s184 = smul.addr %s183, 8
      %s185 = scalar_lea.vmem %s2, %s184
      // Predicated region
      $region29: #{pix2pix_block.3} parent=27 // pred_check
        %p186 = pneg %p78
      $region30: #{pix2pix_block.3} parent=27 // pred_check_branch
        %188 = sbr.rel (%p186) target = $region32
      $region31: #{pix2pix_block.3} parent=27 // pred_region
        %s189 = smul.u32 6, %s13
      $region32: #{pix2pix_block.3} parent=27 // pred_fallthru
        _
    $region28: #{pix2pix_block.3} parent=5 // pred_fallthru
      _
    %p190 = scmp.le.s32.totalorder 2, %s8
    // Predicated region
    $region33: #{pix2pix_block.3} parent=5 // pred_check
      %p191 = pneg %p190
    $region34: #{pix2pix_block.3} parent=5 // pred_check_branch
      %193 = sbr.rel (%p191) target = $region36
    $region35: #{pix2pix_block.3} parent=5 // pred_region
      %s194 = ssub.s32 %s8, 2
      // Predicated region
      $region37: #{pix2pix_block.3} parent=35 // pred_check
        %p195 = pneg %p84
      $region38: #{pix2pix_block.3} parent=35 // pred_check_branch
        %197 = sbr.rel (%p195) target = $region40
      $region39: #{pix2pix_block.3} parent=35 // pred_region
        %s198 = smul.u32 6, %s14
        %p199 = scmp.lt.s32.totalorder %s198, 17
        %s200 = scalar_select %p199, %s198, 17
        %s201 = smul.addr %s200, 8
        %s202 = scalar_lea.vmem %s2, %s201
      $region40: #{pix2pix_block.3} parent=35 // pred_fallthru
        _
    $region36: #{pix2pix_block.3} parent=5 // pred_fallthru
      _
  $region6: #{pix2pix_block.3} parent=0 // loop_footer
    %s12 = sadd.s32 1, %s8
  $region7: #{pix2pix_block.3} parent=0 // loop_footer_branch
    %7 = sbr.rel target = $region3
  $region8: #{pix2pix_block.3} parent=0 // loop_exit
    _

// kernel: pix2pix_block.2
$region0: #{pix2pix_block.2}
  #allocation0 [shape = 'u32[]', space=smem, size = 0x4, offset = 0x4, fixed_abs, tag = 'smem constant byte address 0x4 - core index']
  #allocation1 [shape = 'u32[72,128]{1,0:T(1,128)}', space=vmem, size = 0x9000, scoped, tag = 'internal scratch']
  #allocation2 [shape = 'f32[1,128]{1,0:T(1,128)}', space=vmem, size = 0x200, scoped, tag = 'scratch operand']
  #allocation3 [shape = 'f32[1,128]{1,0:T(1,128)}', space=vmem, size = 0x200, scoped, tag = 'scratch operand']
  %s0 = inlined_call_operand.vmem [shape: bf16[144,64], index: 0, kind: input, shape index: {}]
  %s1 = inlined_call_operand.vmem [shape: bf16[64,128], index: 1, kind: input, shape index: {}]
  %s2 = inlined_call_operand.vmem [shape: f32[1,128], index: 2, kind: input, shape index: {}]
  %s3 = inlined_call_operand.vmem [shape: f32[1,128], index: 3, kind: input, shape index: {}]
  %s4 = inlined_call_operand.vmem [shape: f32[144,128], index: 4, kind: output, shape index: {0}]
  %s5 = inlined_call_operand.vmem [shape: f32[8,128], index: 5, kind: output, shape index: {1}]
  %6 = xla_tuple %s4, %s5
  %s7 = sld [smem:[#allocation0]]
  $region65: #{pix2pix_block.2} parent=0
    _
  %s9 = ssub.s32 1, %s7
  %s10 = scalar_select 0, %s9, %s7
  loop: start=0, step=1, limit=5
  $region2: #{pix2pix_block.2} parent=0 // loop_pre_header
    _
  $region3: #{pix2pix_block.2} parent=0 // loop_header
    %s12 = sphi 0, %s16
    %p13 = scmp.ge.s32.totalorder %s12, 5
    %s22 = sphi 0, %s24
    %s25 = sphi 0, %s22
    %s26 = sphi 0, %s25
    %s42 = sphi 0, %s26
    %s46 = sphi 0, %s46
    %s48 = sphi 0, %s46
    %s49 = sphi 0, %s48
    %s63 = sphi 0, %s49
    %s67 = sphi 0, %s67
    %s69 = sphi 0, %s67
    %s70 = sphi 0, %s69
    %s84 = sphi 0, %s70
    %s88 = sphi 0, %s88
    %s90 = sphi 0, %s88
    %s91 = sphi 0, %s90
    %s105 = sphi 0, %s91
    %s111 = sphi 0, %s113
    %s114 = sphi 0, %s111
    %s115 = sphi 0, %s114
    %s131 = sphi 0, %s115
    %s135 = sphi 0, %s135
    %s137 = sphi 0, %s135
    %s138 = sphi 0, %s137
    %s152 = sphi 0, %s138
  $region4: #{pix2pix_block.2} parent=0 // loop_header_branch
    %15 = sbr.rel (%p13) target = $region8
  $region5: #{pix2pix_block.2} parent=0 // loop_body
    %s17 = ssub.s32 %s12, 1
    %s18 = ssub.s32 %s12, 2
    %s19 = sadd.s32 %s12, 1
    %s20 = ssub.s32 %s12, %s19
    %p21 = scmp.eq.s32.totalorder %s20, 0
    %s23 = sadd.s32 %s22, 1
    %s24 = scalar_select %p21, %s22, %s23
    %p27 = pneg %p21
    %p28 = scmp.eq.s32.totalorder %s12, 2
    %p29 = por %p27, %p28
    %p30 = scmp.ne.s32.totalorder %s22, %s25
    %p31 = scmp.eq.s32.totalorder %s12, 0
    %p32 = por %p30, %p31
    %p33 = scmp.ne.s32.totalorder %s22, %s25
    %p34 = scmp.eq.s32.totalorder %s17, 2
    %p35 = por %p33, %p34
    %p36 = scmp.ne.s32.totalorder %s25, %s26
    %p37 = scmp.eq.s32.totalorder %s17, 0
    %p38 = por %p36, %p37
    %p39 = scmp.ne.s32.totalorder %s25, %s26
    %p40 = scmp.eq.s32.totalorder %s18, 2
    %p41 = por %p39, %p40
    %p43 = scmp.ne.s32.totalorder %s26, %s42
    %p44 = scmp.eq.s32.totalorder %s18, 0
    %p45 = por %p43, %p44
    %s47 = sadd.s32 %s46, 1
    %p50 = scmp.eq.s32.totalorder %s12, 2
    %p51 = scmp.ne.s32.totalorder %s46, %s48
    %p52 = scmp.eq.s32.totalorder %s12, 0
    %p53 = por %p51, %p52
    %p54 = scmp.ne.s32.totalorder %s46, %s48
    %p55 = scmp.eq.s32.totalorder %s17, 2
    %p56 = por %p54, %p55
    %p57 = scmp.ne.s32.totalorder %s48, %s49
    %p58 = scmp.eq.s32.totalorder %s17, 0
    %p59 = por %p57, %p58
    %p60 = scmp.ne.s32.totalorder %s48, %s49
    %p61 = scmp.eq.s32.totalorder %s18, 2
    %p62 = por %p60, %p61
    %p64 = scmp.ne.s32.totalorder %s49, %s63
    %p65 = scmp.eq.s32.totalorder %s18, 0
    %p66 = por %p64, %p65
    %s68 = sadd.s32 %s67, 1
    %p71 = scmp.eq.s32.totalorder %s12, 2
    %p72 = scmp.ne.s32.totalorder %s67, %s69
    %p73 = scmp.eq.s32.totalorder %s12, 0
    %p74 = por %p72, %p73
    %p75 = scmp.ne.s32.totalorder %s67, %s69
    %p76 = scmp.eq.s32.totalorder %s17, 2
    %p77 = por %p75, %p76
    %p78 = scmp.ne.s32.totalorder %s69, %s70
    %p79 = scmp.eq.s32.totalorder %s17, 0
    %p80 = por %p78, %p79
    %p81 = scmp.ne.s32.totalorder %s69, %s70
    %p82 = scmp.eq.s32.totalorder %s18, 2
    %p83 = por %p81, %p82
    %p85 = scmp.ne.s32.totalorder %s70, %s84
    %p86 = scmp.eq.s32.totalorder %s18, 0
    %p87 = por %p85, %p86
    %s89 = sadd.s32 %s88, 1
    %p92 = scmp.eq.s32.totalorder %s12, 2
    %p93 = scmp.ne.s32.totalorder %s88, %s90
    %p94 = scmp.eq.s32.totalorder %s12, 0
    %p95 = por %p93, %p94
    %p96 = scmp.ne.s32.totalorder %s88, %s90
    %p97 = scmp.eq.s32.totalorder %s17, 2
    %p98 = por %p96, %p97
    %p99 = scmp.ne.s32.totalorder %s90, %s91
    %p100 = scmp.eq.s32.totalorder %s17, 0
    %p101 = por %p99, %p100
    %p102 = scmp.ne.s32.totalorder %s90, %s91
    %p103 = scmp.eq.s32.totalorder %s18, 2
    %p104 = por %p102, %p103
    %p106 = scmp.ne.s32.totalorder %s91, %s105
    %p107 = scmp.eq.s32.totalorder %s18, 0
    %p108 = por %p106, %p107
    %s109 = ssub.s32 %s12, %s19
    %p110 = scmp.eq.s32.totalorder %s109, 0
    %s112 = sadd.s32 %s111, 1
    %s113 = scalar_select %p110, %s111, %s112
    %p116 = pneg %p110
    %p117 = scmp.eq.s32.totalorder %s12, 2
    %p118 = por %p116, %p117
    %p119 = scmp.ne.s32.totalorder %s111, %s114
    %p120 = scmp.eq.s32.totalorder %s12, 0
    %p121 = por %p119, %p120
    %p122 = scmp.ne.s32.totalorder %s111, %s114
    %p123 = scmp.eq.s32.totalorder %s17, 2
    %p124 = por %p122, %p123
    %p125 = scmp.ne.s32.totalorder %s114, %s115
    %p126 = scmp.eq.s32.totalorder %s17, 0
    %p127 = por %p125, %p126
    %p128 = scmp.ne.s32.totalorder %s114, %s115
    %p129 = scmp.eq.s32.totalorder %s18, 2
    %p130 = por %p128, %p129
    %p132 = scmp.ne.s32.totalorder %s115, %s131
    %p133 = scmp.eq.s32.totalorder %s18, 0
    %p134 = por %p132, %p133
    %s136 = sadd.s32 %s135, 1
    %p139 = scmp.eq.s32.totalorder %s12, 2
    %p140 = scmp.ne.s32.totalorder %s135, %s137
    %p141 = scmp.eq.s32.totalorder %s12, 0
    %p142 = por %p140, %p141
    %p143 = scmp.ne.s32.totalorder %s135, %s137
    %p144 = scmp.eq.s32.totalorder %s17, 2
    %p145 = por %p143, %p144
    %p146 = scmp.ne.s32.totalorder %s137, %s138
    %p147 = scmp.eq.s32.totalorder %s17, 0
    %p148 = por %p146, %p147
    %p149 = scmp.ne.s32.totalorder %s137, %s138
    %p150 = scmp.eq.s32.totalorder %s18, 2
    %p151 = por %p149, %p150
    %p153 = scmp.ne.s32.totalorder %s138, %s152
    %p154 = scmp.eq.s32.totalorder %s18, 0
    %p155 = por %p153, %p154
    %p156 = scmp.le.s32.totalorder 1, %s12
    %p157 = scmp.lt.s32.totalorder %s12, 4
    %p158 = pnand %p156, %p157
    %p159 = pneg %p158
    // Predicated region
    $region9: #{pix2pix_block.2} parent=5 // pred_check
      _
    $region10: #{pix2pix_block.2} parent=5 // pred_check_branch
      %161 = sbr.rel (%p158) target = $region12
    $region11: #{pix2pix_block.2} parent=5 // pred_region
      %s162 = ssub.s32 %s12, 1
      // Predicated region
      $region13: #{pix2pix_block.2} parent=11 // pred_check
        %p163 = pneg %p59
      $region14: #{pix2pix_block.2} parent=11 // pred_check_branch
        %165 = sbr.rel (%p163) target = $region16
      $region15: #{pix2pix_block.2} parent=11 // pred_region
        _
      $region16: #{pix2pix_block.2} parent=11 // pred_fallthru
        _
      // Predicated region
      $region17: #{pix2pix_block.2} parent=11 // pred_check
        %p166 = pneg %p80
      $region18: #{pix2pix_block.2} parent=11 // pred_check_branch
        %168 = sbr.rel (%p166) target = $region20
      $region19: #{pix2pix_block.2} parent=11 // pred_region
        _
      $region20: #{pix2pix_block.2} parent=11 // pred_fallthru
        _
      // Predicated region
      $region21: #{pix2pix_block.2} parent=11 // pred_check
        %p169 = pneg %p101
      $region22: #{pix2pix_block.2} parent=11 // pred_check_branch
        %171 = sbr.rel (%p169) target = $region24
      $region23: #{pix2pix_block.2} parent=11 // pred_region
        _
      $region24: #{pix2pix_block.2} parent=11 // pred_fallthru
        _
    $region12: #{pix2pix_block.2} parent=5 // pred_fallthru
      _
    %p172 = scmp.lt.s32.totalorder %s12, 3
    // Predicated region
    $region25: #{pix2pix_block.2} parent=5 // pred_check
      %p173 = pneg %p172
    $region26: #{pix2pix_block.2} parent=5 // pred_check_branch
      %175 = sbr.rel (%p173) target = $region28
    $region27: #{pix2pix_block.2} parent=5 // pred_region
      // Predicated region
      $region29: #{pix2pix_block.2} parent=27 // pred_check
        %p176 = pneg %p32
      $region30: #{pix2pix_block.2} parent=27 // pred_check_branch
        %178 = sbr.rel (%p176) target = $region32
      $region31: #{pix2pix_block.2} parent=27 // pred_region
        %s179 = smul.u32 6, %s12
        %p180 = scmp.lt.s32.totalorder %s179, 17
        %s181 = scalar_select %p180, %s179, 17
        %s182 = smul.addr %s181, 4
        %s183 = scalar_lea.vmem %s0, %s182
        %s184 = smul.u32 6, %s12
      $region32: #{pix2pix_block.2} parent=27 // pred_fallthru
        _
    $region28: #{pix2pix_block.2} parent=5 // pred_fallthru
      _
    %p185 = scmp.le.s32.totalorder 1, %s12
    %p186 = scmp.lt.s32.totalorder %s12, 4
    %p187 = pnand %p185, %p186
    %p188 = pneg %p187
    // Predicated region
    $region33: #{pix2pix_block.2} parent=5 // pred_check
      _
    $region34: #{pix2pix_block.2} parent=5 // pred_check_branch
      %190 = sbr.rel (%p187) target = $region36
    $region35: #{pix2pix_block.2} parent=5 // pred_region
      %s191 = ssub.s32 %s12, 1
      %s192 = smul.u32 6, %s17
      %p193 = scmp.lt.s32.totalorder %s192, 17
      %s194 = scalar_select %p193, %s192, 17
      %s195 = smul.addr %s194, 4
      %s196 = scalar_lea.vmem %s0, %s195
      %p197 = pneg %p38
      %p198 = pneg %p35
      %p199 = pneg %p59
      %p200 = pneg %p56
      %p201 = pneg %p80
      %p202 = pneg %p77
      %p203 = pneg %p101
      %p204 = pneg %p98
      %p205 = pneg %p127
      %p206 = pneg %p124
      %s207 = smul.u32 6, %s17
      %p208 = scmp.lt.s32.totalorder %s207, 17
      %s209 = scalar_select %p208, %s207, 17
      %s210 = smul.addr %s209, 8
      %s211 = scalar_lea.vmem %s4, %s210
      %p212 = pneg %p148
      %p213 = pneg %p145
      %s214 = smul.u32 6, %s17
      %p215 = scmp.lt.s32.totalorder %s214, 17
      %s216 = scalar_select %p215, %s214, 17
      %s217 = smul.addr %s216, 4
      %s218 = scalar_lea.vmem %s0, %s217
      %s219 = smul.u32 6, %s17
      %s220 = smul.u32 6, %s17
      %p221 = scmp.lt.s32.totalorder %s220, 17
      %s222 = scalar_select %p221, %s220, 17
      %s223 = smul.addr %s222, 8
      %s224 = scalar_lea.vmem %s4, %s223
      %s225 = smul.u32 6, %s17
      %p227 = scmp.eq.s32.totalorder %s17, 0
      // Predicated region
      $region37: #{pix2pix_block.2} parent=35 // pred_check
        %p228 = pneg %p227
      $region38: #{pix2pix_block.2} parent=35 // pred_check_branch
        %230 = sbr.rel (%p228) target = $region40
      $region39: #{pix2pix_block.2} parent=35 // pred_region
        %231 = vst [vmem:[#allocation2] sm:$0x1] 0.0
        %232 = vst [vmem:[#allocation3] sm:$0x1] 0.0
        %233 = vst [vmem:[%s5] sm:$0xff] 0.0
      $region40: #{pix2pix_block.2} parent=35 // pred_fallthru
        _
      %v234 = vld [vmem:[%s218] sm:$0xf]
      %v235 = vld [vmem:[%s218 + $0x4] sm:$0xf]
      %v236 = vld [vmem:[%s218 + $0x8] sm:$0xf]
      %v237 = vld [vmem:[%s218 + $0xc] sm:$0xf]
      %v238 = vld [vmem:[%s218 + $0x10] sm:$0xf]
      %v239 = vld [vmem:[%s218 + $0x14] sm:$0xf]
      %v240 = vld [vmem:[%s1] sm:$0xf]
      %v241 = vld [vmem:[%s1 + $0x4] sm:$0xf]
      %v242 = vld [vmem:[%s1 + $0x8] sm:$0xf]
      %v243 = vld [vmem:[%s1 + $0xc] sm:$0xf]
      %v244 = vld [vmem:[%s1 + $0x10] sm:$0xf]
      %v245 = vld [vmem:[%s1 + $0x14] sm:$0xf]
      %v246 = vld [vmem:[%s1 + $0x18] sm:$0xf]
      %v247 = vld [vmem:[%s1 + $0x1c] sm:$0xf]
      %v254 = vunpack.c.l.b16 %v234
      %v255 = vunpack.c.l.b16 %v235
      %v256 = vunpack.c.l.b16 %v236
      %v257 = vunpack.c.l.b16 %v237
      %v258 = vunpack.c.l.b16 %v238
      %v259 = vunpack.c.l.b16 %v239
      %v260 = vpack.c.b16 %v255, %v254
      %v261 = vpack.c.b16 %v257, %v256
      %v262 = vpack.c.b16 %v259, %v258
      %v271 = vunpack.c.l.b16 %v240
      %v272 = vunpack.c.l.b16 %v241
      %v273 = vunpack.c.l.b16 %v242
      %v274 = vunpack.c.l.b16 %v243
      %v275 = vunpack.c.l.b16 %v244
      %v276 = vunpack.c.l.b16 %v245
      %v277 = vunpack.c.l.b16 %v246
      %v278 = vunpack.c.l.b16 %v247
      %v279 = vpack.c.b16 %v272, %v271
      %v280 = vpack.c.b16 %v274, %v273
      %v281 = vpack.c.b16 %v276, %v275
      %v282 = vpack.c.b16 %v278, %v277
      %vm287 = vcmask 523264
      %v289 = vsel %vm287, %v260, 0
      %v292 = vsel %vm287, %v261, 0
      %v295 = vsel %vm287, %v262, 0
      %297 = vmatpush.bf16.msra.mxu0 0
      %298 = vmatpush.bf16.msra.mxu0 0
      %299 = vmatpush.bf16.msra.mxu0 0
      %300 = vmatpush.bf16.msra.mxu0 0
      %301 = vmatpush.bf16.msra.mxu0 %v282
      %302 = vmatpush.bf16.msra.mxu0 %v281
      %303 = vmatpush.bf16.msra.mxu0 %v280
      %304 = vmatpush.bf16.msra.mxu0 %v279
      %305 = vmatmul.bf16.gmra.mxu0 %v289
      %v306 = vpop.f32.mrf.mxu0
      %v307 = vadd.f32 0.0, %v306
      %v308 = vpop.f32.mrf.mxu0
      %v309 = vadd.f32 0.0, %v308
      %310 = vmatmul.bf16.gmra.mxu0 %v292
      %v311 = vpop.f32.mrf.mxu0
      %v312 = vadd.f32 0.0, %v311
      %v313 = vpop.f32.mrf.mxu0
      %v314 = vadd.f32 0.0, %v313
      %315 = vmatmul.bf16.gmra.mxu0 %v295
      %v316 = vpop.f32.mrf.mxu0
      %v317 = vadd.f32 0.0, %v316
      %v318 = vpop.f32.mrf.mxu0
      %v319 = vadd.f32 0.0, %v318
      %320 = vdwg.mxu0
      %321 = vst [vmem:[%s224] sm:$0xff] %v307
      %322 = vst [vmem:[%s224 + $0x8] sm:$0xff] %v309
      %323 = vst [vmem:[%s224 + $0x10] sm:$0xff] %v312
      %324 = vst [vmem:[%s224 + $0x18] sm:$0xff] %v314
      %325 = vst [vmem:[%s224 + $0x20] sm:$0xff] %v317
      %326 = vst [vmem:[%s224 + $0x28] sm:$0xff] %v319
      %s327 = smul.u32 %s17, 48
      %v328 = vlaneseq
      %v329 = vshrl.u32 %v328, 7
      %v330 = vadd.s32 %v329, 8
      %v331 = vadd.s32 %v329, 16
      %v332 = vadd.s32 %v329, 24
      %v333 = vadd.s32 %v329, 32
      %v334 = vadd.s32 %v329, 40
      %v335 = vstv %s327
      %v336 = vadd.s32 %v335, %v329
      %v337 = vadd.s32 %v335, %v330
      %v338 = vadd.s32 %v335, %v331
      %v339 = vadd.s32 %v335, %v332
      %v340 = vadd.s32 %v335, %v333
      %v341 = vadd.s32 %v335, %v334
      %vm342 = vcmp.lt.s32.totalorder %v336, 128
      %vm343 = vcmp.lt.s32.totalorder %v337, 128
      %vm344 = vcmp.lt.s32.totalorder %v338, 128
      %vm345 = vcmp.lt.s32.totalorder %v339, 128
      %vm346 = vcmp.lt.s32.totalorder %v340, 128
      %vm347 = vcmp.lt.s32.totalorder %v341, 128
      %v348 = vsel %vm342, 1, 0
      %v349 = vsel %vm343, 1, 0
      %v350 = vsel %vm344, 1, 0
      %v351 = vsel %vm345, 1, 0
      %v352 = vsel %vm346, 1, 0
      %v353 = vsel %vm347, 1, 0
      %vm354 = vcmp.eq.s32.totalorder %v348, 1
      %vm355 = vcmp.eq.s32.totalorder %v349, 1
      %vm356 = vcmp.eq.s32.totalorder %v350, 1
      %vm357 = vcmp.eq.s32.totalorder %v351, 1
      %vm358 = vcmp.eq.s32.totalorder %v352, 1
      %vm359 = vcmp.eq.s32.totalorder %v353, 1
      %v360 = vsel %vm354, %v307, 0.0
      %v361 = vsel %vm355, %v309, 0.0
      %v362 = vsel %vm356, %v312, 0.0
      %v363 = vsel %vm357, %v314, 0.0
      %v364 = vsel %vm358, %v317, 0.0
      %v365 = vsel %vm359, %v319, 0.0
      %v366 = vld [vmem:[#allocation2] sm:$0x1]
      %v367 = vadd.f32 %v360, %v361
      %v368 = vadd.f32 %v367, %v362
      %v369 = vadd.f32 %v368, %v363
      %v370 = vadd.f32 %v369, %v364
      %v371 = vadd.f32 %v370, %v365
      %v372 = vrot.slane %v371, 4
      %v373 = vadd.f32 %v371, %v372
      %v374 = vrot.slane %v373, 2
      %v375 = vadd.f32 %v373, %v374
      %v376 = vrot.slane %v375, 1
      %v377 = vadd.f32 %v375, %v376
      %v378 = vadd.f32 %v366, %v377
      %379 = vst [vmem:[#allocation2] sm:$0x1] %v378
      %v380 = vld [vmem:[#allocation3] sm:$0x1]
      %v381 = vmul.f32 %v360, %v360
      %v382 = vmul.f32 %v361, %v361
      %v383 = vmul.f32 %v362, %v362
      %v384 = vmul.f32 %v363, %v363
      %v385 = vmul.f32 %v364, %v364
      %v386 = vmul.f32 %v365, %v365
      %v387 = vadd.f32 %v381, %v382
      %v388 = vadd.f32 %v387, %v383
      %v389 = vadd.f32 %v388, %v384
      %v390 = vadd.f32 %v389, %v385
      %v391 = vadd.f32 %v390, %v386
      %v392 = vrot.slane %v391, 4
      %v393 = vadd.f32 %v391, %v392
      %v394 = vrot.slane %v393, 2
      %v395 = vadd.f32 %v393, %v394
      %v396 = vrot.slane %v395, 1
      %v397 = vadd.f32 %v395, %v396
      %v398 = vadd.f32 %v380, %v397
      %399 = vst [vmem:[#allocation3] sm:$0x1] %v398
      %p400 = scmp.eq.s32.totalorder %s17, 2
      // Predicated region
      $region41: #{pix2pix_block.2} parent=35 // pred_check
        %p401 = pneg %p400
      $region42: #{pix2pix_block.2} parent=35 // pred_check_branch
        %403 = sbr.rel (%p401) target = $region44
      $region43: #{pix2pix_block.2} parent=35 // pred_region
        %v404 = vld [vmem:[#allocation2] sm:$0x1]
        %v405 = vmul.f32 %v404, 0.0078125
        %v406 = vld [vmem:[#allocation3] sm:$0x1]
        %v407 = vmul.f32 %v406, 0.0078125
        %v408 = vmul.f32 %v405, %v405
        %v409 = vsub.f32 %v407, %v408
        %v410 = vadd.f32 %v409, 1e-05
        %v411 = vrsqrt.pop %v410
        %v412 = vmul.f32 %v411, %v410
        %v413 = vmul.f32 %v412, %v411
        %v414 = vmul.f32 0.5, %v413
        %v415 = vsub.f32 1.5, %v414
        %v416 = vmul.f32 %v411, %v415
        %vm417 = vweird.f32 %v410
        %vm418 = vweird.f32 %v411
        %vm419 = vmor %vm417, %vm418
        %v420 = vsel %vm419, %v411, %v416
        %v421 = vld [vmem:[%s2] sm:$0x1]
        %v422 = vmul.f32 %v421, %v420
        %v423 = vld [vmem:[%s3] sm:$0x1]
        %v424 = vmul.f32 %v405, %v422
        %v425 = vsub.f32 %v423, %v424
        %v427 = vperm.slane %v425, 0
        %vm429 = vcmask 1040384
        %v430 = vsel %vm429, %v422, %v427
        %vm431 = vcmask 1041408
        %v432 = vsel %vm431, %v430, 0.0
        %433 = vst [vmem:[%s5] sm:$0xff] %v432
      $region44: #{pix2pix_block.2} parent=35 // pred_fallthru
        _
      %s434 = smul.u32 6, %s17
      %p435 = scmp.lt.s32.totalorder %s434, 17
      %s436 = scalar_select %p435, %s434, 17
      %s437 = smul.addr %s436, 8
      %s438 = scalar_lea.vmem %s4, %s437
      // Predicated region
      $region45: #{pix2pix_block.2} parent=35 // pred_check
        %p439 = pneg %p124
      $region46: #{pix2pix_block.2} parent=35 // pred_check_branch
        %441 = sbr.rel (%p439) target = $region48
      $region47: #{pix2pix_block.2} parent=35 // pred_region
        %s442 = smul.u32 6, %s17
      $region48: #{pix2pix_block.2} parent=35 // pred_fallthru
        _
      // Predicated region
      $region49: #{pix2pix_block.2} parent=35 // pred_check
        %p443 = pneg %p145
      $region50: #{pix2pix_block.2} parent=35 // pred_check_branch
        %445 = sbr.rel (%p443) target = $region52
      $region51: #{pix2pix_block.2} parent=35 // pred_region
        _
      $region52: #{pix2pix_block.2} parent=35 // pred_fallthru
        _
      // Predicated region
      $region53: #{pix2pix_block.2} parent=35 // pred_check
        %p446 = pneg %p145
      $region54: #{pix2pix_block.2} parent=35 // pred_check_branch
        %448 = sbr.rel (%p446) target = $region56
      $region55: #{pix2pix_block.2} parent=35 // pred_region
        _
      $region56: #{pix2pix_block.2} parent=35 // pred_fallthru
        _
    $region36: #{pix2pix_block.2} parent=5 // pred_fallthru
      _
    %p449 = scmp.le.s32.totalorder 2, %s12
    // Predicated region
    $region57: #{pix2pix_block.2} parent=5 // pred_check
      %p450 = pneg %p449
    $region58: #{pix2pix_block.2} parent=5 // pred_check_branch
      %452 = sbr.rel (%p450) target = $region60
    $region59: #{pix2pix_block.2} parent=5 // pred_region
      %s453 = ssub.s32 %s12, 2
      // Predicated region
      $region61: #{pix2pix_block.2} parent=59 // pred_check
        %p454 = pneg %p130
      $region62: #{pix2pix_block.2} parent=59 // pred_check_branch
        %456 = sbr.rel (%p454) target = $region64
      $region63: #{pix2pix_block.2} parent=59 // pred_region
        %s457 = smul.u32 6, %s18
        %p458 = scmp.lt.s32.totalorder %s457, 17
        %s459 = scalar_select %p458, %s457, 17
        %s460 = smul.addr %s459, 8
        %s461 = scalar_lea.vmem %s4, %s460
      $region64: #{pix2pix_block.2} parent=59 // pred_fallthru
        _
    $region60: #{pix2pix_block.2} parent=5 // pred_fallthru
      _
  $region6: #{pix2pix_block.2} parent=0 // loop_footer
    %s16 = sadd.s32 1, %s12
  $region7: #{pix2pix_block.2} parent=0 // loop_footer_branch
    %11 = sbr.rel target = $region3
  $region8: #{pix2pix_block.2} parent=0 // loop_exit
    _

</llo_original>
